<compile_context>
chip_gen: v7x
topology: tpu7x:2x2x1
jax: 0.10.0
libtpu: 0.0.40
codegen_flags: <defaults>
</compile_context>

<pallas_src>
import functools

import jax
import jax.numpy as jnp
from jax.experimental import pallas as pl
from jax.experimental.pallas import tpu as pltpu


def _round_up(n, m):
    return ((n + m - 1) // m) * m


def _vmem_budget_bytes():
    """Generation-aware VMEM cap: v7x has 64 MiB physical (leave headroom);
    v5e/v6e have 128 MiB physical (32 MiB scoped default)."""
    try:
        kind = jax.devices()[0].device_kind.lower()
    except Exception:
        kind = ""
    if "v7" in kind or "7x" in kind:
        return 40 * 1024 * 1024
    if "v5" in kind or "v6" in kind:
        return 64 * 1024 * 1024
    return 40 * 1024 * 1024          # unknown chip -> conservative


def _dynamic_fc_kernel(x_ref, w_ref, out_ref, z_ref, *, degree, knots, act,
                       prepend_t):
    """Processes one batch tile.

    x_ref:   (TB, 1 + ind)   column 0 = treatment t in [0, 1]
    w_ref:   (d*ind + d, OUT_W) fused [W_flat ; bias.T] (+ a leading zero
             column when prepend_t so the matmul lands results in cols 1..)
    out_ref: (TB, OUT_W)     activated result; col 0 overwritten with t when
             prepend_t (OUT_W = outd or 1+outd, exact — no lane padding)
    z_ref:   (TB, d*ind + d) VMEM scratch holding the fused MXU operand
    """
    x = x_ref[...].astype(jnp.float32)
    t = x[:, 0:1]                                   # (TB, 1)
    feat = x[:, 1:]                                 # (TB, ind)
    ind = feat.shape[1]
    cdt = z_ref.dtype

    # ---- truncated power basis columns (incremental multiplies, no pow) ----
    cols = [jnp.ones_like(t)]                       # 1
    tp = jnp.ones_like(t)
    for _ in range(degree):                         # t, t^2, ..., t^degree
        tp = tp * t
        cols.append(tp)
    for kn in knots:                                # relu(t - knot)^degree
        r = jnp.maximum(t - kn, 0.0)
        rp = r
        for _ in range(degree - 1):
            rp = rp * r
        cols.append(rp)
    d = len(cols)                                   # degree + 1 + len(knots)

    # ---- build fused MXU operand via static slice-stores (no lane concat) ---
    #   z[:, k*ind + i] = basis_k * feat_i          (varying-coefficient term)
    #   z[:, d*ind + k] = basis_k                   (bias term)
    z_ref[:, 0:ind] = feat.astype(cdt)              # basis_0 == 1
    for k in range(1, d):
        z_ref[:, k * ind:(k + 1) * ind] = (cols[k] * feat).astype(cdt)
    base = d * ind
    for k in range(d):
        z_ref[:, base + k:base + k + 1] = cols[k].astype(cdt)

    # ---- single fused MXU matmul, f32 accumulation ----
    acc = jnp.dot(z_ref[...], w_ref[...], preferred_element_type=jnp.float32)

    if act == "relu":
        acc = jnp.maximum(acc, 0.0)
    elif act == "tanh":
        acc = jnp.tanh(acc)
    elif act == "sigmoid":
        acc = jax.nn.sigmoid(acc)
    # else: no activation

    out_ref[...] = acc.astype(out_ref.dtype)
    if prepend_t:
        # Column 0 of w is all-zero, so acc[:,0] was a dummy; overwrite with t
        # (activation is applied before the concat in the torch module).
        out_ref[:, 0:1] = t.astype(out_ref.dtype)


def dynamic_fc(x, weight, bias, *, degree, knots, act="relu",
               isbias=1, islastlayer=0, compute_dtype=jnp.float32,
               out_dtype=None, batch_tile=2048):
    """x: (batch, 1+ind); weight: (ind, outd, d); bias: (outd, d) or None."""
    assert isinstance(degree, int) and degree >= 1, "degree must be int >= 1"
    batch, ind_p1 = x.shape
    ind, outd, d = weight.shape
    assert ind_p1 == ind + 1
    assert d == degree + 1 + len(knots)
    if out_dtype is None:
        out_dtype = x.dtype

    # Fused weight: rows [k*ind + i] = weight[i, :, k]; rows [d*ind + k] = bias[:, k].
    K = d * ind + d
    w_flat = jnp.transpose(weight, (2, 0, 1)).reshape(d * ind, outd)
    if isbias and bias is not None:
        b_rows = jnp.transpose(bias, (1, 0))                  # (d, outd)
    else:
        b_rows = jnp.zeros((d, outd), weight.dtype)
    w_aug = jnp.concatenate([w_flat, b_rows], axis=0)         # (K, outd)

    prepend_t = not islastlayer
    if prepend_t:
        # Zero column 0 -> matmul lands real results in cols 1..; kernel
        # overwrites col 0 with the treatment. Avoids any lane shift of acc
        # and the wrapper-side concat pass.
        w_aug = jnp.concatenate([jnp.zeros((K, 1), w_aug.dtype), w_aug], axis=1)
    out_w = w_aug.shape[1]                                    # outd (+1)
    w_aug = w_aug.astype(compute_dtype)

    # ---- generation-aware batch tiling -------------------------------------
    bpe_in = jnp.dtype(x.dtype).itemsize
    bpe_out = jnp.dtype(out_dtype).itemsize
    bpe_c = jnp.dtype(compute_dtype).itemsize
    budget = _vmem_budget_bytes()
    w_bytes = 2 * K * out_w * bpe_c                 # resident weight (2 bufs)
    per_row = 2 * ind_p1 * bpe_in + 2 * out_w * bpe_out + K * bpe_c
    avail = int(budget * 0.75) - w_bytes
    tb_cap = max(8, (avail // per_row) // 8 * 8) if avail > per_row * 8 else 8

    batch_r8 = _round_up(batch, 8)
    tb = min(_round_up(batch_tile, 8), batch_r8, tb_cap)
    if batch_r8 >= 16:                              # >=2 tiles so v7x's two TCs
        tb = min(tb, _round_up((batch_r8 + 1) // 2, 8))   # both get work
    grid = pl.cdiv(batch, tb)                       # partial last tile is fine:
                                                    # no cross-row reduction

    kernel = functools.partial(
        _dynamic_fc_kernel, degree=degree,
        knots=tuple(float(k) for k in knots), act=act, prepend_t=prepend_t)

    out = pl.pallas_call(
        kernel,
        out_shape=jax.ShapeDtypeStruct((batch, out_w), out_dtype),
        grid=(grid,),
        in_specs=[
            pl.BlockSpec((tb, ind_p1), lambda i: (i, 0)),     # batch tile
            pl.BlockSpec((K, out_w), lambda i: (0, 0)),       # resident weight
        ],
        out_specs=pl.BlockSpec((tb, out_w), lambda i: (i, 0)),
        scratch_shapes=[pltpu.VMEM((tb, K), compute_dtype)],  # fused z operand
        compiler_params=pltpu.CompilerParams(
            dimension_semantics=("parallel",),
            vmem_limit_bytes=budget),
    )(x, w_aug)
    return out


def dynamic_fc_ref(x, weight, bias, *, degree, knots, act="relu",
                   isbias=1, islastlayer=0):
    """Pure-JAX reference mirroring the PyTorch forward exactly."""
    t = x[:, 0]
    feat = x[:, 1:]
    xfw = jnp.einsum("bi,iod->bod", feat, weight)          # (batch, outd, d)
    cols = [jnp.ones_like(t)] + [t ** p for p in range(1, degree + 1)]
    for kn in knots:
        r = jnp.maximum(t - kn, 0.0)
        cols.append(r if degree == 1 else r ** degree)
    basis = jnp.stack(cols, axis=1)                        # (batch, d)
    out = jnp.sum(xfw * basis[:, None, :], axis=2)         # (batch, outd)
    if isbias:
        out = out + basis @ bias.T
    if act == "relu":
        out = jnp.maximum(out, 0.0)
    elif act == "tanh":
        out = jnp.tanh(out)
    elif act == "sigmoid":
        out = jax.nn.sigmoid(out)
    if not islastlayer:
        out = jnp.concatenate([t[:, None], out], axis=1)
    return out


def _make_inputs(key, batch, ind, outd, degree, knots):
    d = degree + 1 + len(knots)
    k_t, k_f, k_w, k_b = jax.random.split(key, 4)
    treat = jax.random.uniform(k_t, (batch, 1), jnp.float32)        # in [0,1]
    feat = jax.random.uniform(k_f, (batch, ind), jnp.float32)
    x = jnp.concatenate([treat, feat], axis=1)                      # (batch, 1+ind)
    weight = jax.random.uniform(k_w, (ind, outd, d), jnp.float32)   # torch.rand-like
    bias = jax.random.uniform(k_b, (outd, d), jnp.float32)
    return x, weight, bias


if __name__ == "__main__":
    degree = 2
    knots = [1.0 / 3.0, 2.0 / 3.0]

    # ---- tiny exact-semantics checks (f32), hidden layer (t re-prepended) ----
    x, w, b = _make_inputs(jax.random.PRNGKey(0), 8, 4, 8, degree, knots)
    out = jax.block_until_ready(
        dynamic_fc(x, w, b, degree=degree, knots=knots, act="relu",
                   isbias=1, islastlayer=0))
    ref = dynamic_fc_ref(x, w, b, degree=degree, knots=knots, act="relu",
                         isbias=1, islastlayer=0)
    assert out.shape == (8, 9)
    assert jnp.allclose(out, ref, rtol=1e-5, atol=1e-5)

    # ---- f32, last layer + tanh ----
    out_last = jax.block_until_ready(
        dynamic_fc(x, w, b, degree=degree, knots=knots, act="tanh",
                   isbias=1, islastlayer=1))
    ref_last = dynamic_fc_ref(x, w, b, degree=degree, knots=knots, act="tanh",
                              isbias=1, islastlayer=1)
    assert out_last.shape == (8, 8)
    assert jnp.allclose(out_last, ref_last, rtol=1e-5, atol=1e-5)

    # ---- no-bias + sigmoid path ----
    out_nb = jax.block_until_ready(
        dynamic_fc(x, w, None, degree=degree, knots=knots, act="sigmoid",
                   isbias=0, islastlayer=0))
    ref_nb = dynamic_fc_ref(x, w, None, degree=degree, knots=knots,
                            act="sigmoid", isbias=0, islastlayer=0)
    assert jnp.allclose(out_nb, ref_nb, rtol=1e-5, atol=1e-5)

    # ---- moderate shape: multi-tile grid + masked partial last tile ----
    x2, w2, b2 = _make_inputs(jax.random.PRNGKey(1), 300, 25, 50, degree, knots)
    out2 = jax.block_until_ready(
        dynamic_fc(x2, w2, b2, degree=degree, knots=knots, act="relu",
                   isbias=1, islastlayer=0))
    ref2 = dynamic_fc_ref(x2, w2, b2, degree=degree, knots=knots, act="relu",
                          isbias=1, islastlayer=0)
    assert out2.shape == (300, 51)
    assert jnp.allclose(out2, ref2, rtol=5e-3, atol=5e-3)

    # ---- bf16 MXU operands + bf16 output (v6e/v7x traffic reduction) ----
    out2_bf16 = jax.block_until_ready(
        dynamic_fc(x2, w2, b2, degree=degree, knots=knots, act="relu",
                   isbias=1, islastlayer=0,
                   compute_dtype=jnp.bfloat16, out_dtype=jnp.bfloat16))
    assert out2_bf16.dtype == jnp.bfloat16
    assert jnp.allclose(out2_bf16.astype(jnp.float32), ref2, rtol=5e-2, atol=5e-1)

    print("KERNEL_OK")
</pallas_src>

<mosaic_0001>
module attributes {stable_mosaic.version = 11 : i64} {
  func.func @_dynamic_fc_kernel(%arg0: i32, %arg1: memref<8x5xf32, #tpu.memory_space<vmem>>, %arg2: memref<25x9xf32, #tpu.memory_space<vmem>>, %arg3: memref<8x9xf32, #tpu.memory_space<vmem>>, %arg4: memref<8x25xf32, #tpu.memory_space<vmem>>) attributes {dimension_semantics = [#tpu.dimension_semantics<parallel>], iteration_bounds = array<i64: 1>, scalar_prefetch = 0 : i64, scratch_operands = 1 : i64, tpu.core_type = #tpu.core_type<tc>, window_params = [{transform_indices = @transform_0, window_bounds = array<i64: 8, 5>}, {pipeline_mode = #tpu.pipeline_mode<synchronous>, transform_indices = @transform_1, window_bounds = array<i64: 25, 9>}, {transform_indices = @transform_2, window_bounds = array<i64: 8, 9>}]} {
    %c0 = arith.constant 0 : index
    %c0_0 = arith.constant 0 : index
    %0 = vector.load %arg1[%c0, %c0_0] : memref<8x5xf32, #tpu.memory_space<vmem>>, vector<8x5xf32>
    %1 = vector.extract_strided_slice %0 {offsets = [0, 0], sizes = [8, 1], strides = [1, 1]} : vector<8x5xf32> to vector<8x1xf32>
    %2 = vector.extract_strided_slice %0 {offsets = [0, 1], sizes = [8, 4], strides = [1, 1]} : vector<8x5xf32> to vector<8x4xf32>
    %cst = arith.constant 1.000000e+00 : f32
    %3 = vector.broadcast %cst : f32 to vector<8x1xf32>
    %cst_1 = arith.constant 1.000000e+00 : f32
    %4 = vector.broadcast %cst_1 : f32 to vector<8x1xf32>
    %5 = arith.mulf %4, %1 : vector<8x1xf32>
    %6 = arith.mulf %5, %1 : vector<8x1xf32>
    %cst_2 = arith.constant 0.333333343 : f32
    %7 = vector.broadcast %cst_2 : f32 to vector<8x1xf32>
    %8 = arith.subf %1, %7 : vector<8x1xf32>
    %cst_3 = arith.constant 0.000000e+00 : f32
    %9 = vector.broadcast %cst_3 : f32 to vector<8x1xf32>
    %10 = arith.maximumf %8, %9 : vector<8x1xf32>
    %11 = arith.mulf %10, %10 : vector<8x1xf32>
    %cst_4 = arith.constant 0.666666686 : f32
    %12 = vector.broadcast %cst_4 : f32 to vector<8x1xf32>
    %13 = arith.subf %1, %12 : vector<8x1xf32>
    %cst_5 = arith.constant 0.000000e+00 : f32
    %14 = vector.broadcast %cst_5 : f32 to vector<8x1xf32>
    %15 = arith.maximumf %13, %14 : vector<8x1xf32>
    %16 = arith.mulf %15, %15 : vector<8x1xf32>
    %c0_6 = arith.constant 0 : index
    %c0_7 = arith.constant 0 : index
    %17 = vector.load %arg4[%c0_6, %c0_7] : memref<8x25xf32, #tpu.memory_space<vmem>>, vector<8x4xf32>
    tpu.vector_store %arg4[%c0_6, %c0_7], %2 {strides = array<i32>} : memref<8x25xf32, #tpu.memory_space<vmem>>, vector<8x4xf32>,
    %18 = vector.broadcast %5 : vector<8x1xf32> to vector<8x4xf32>
    %19 = arith.mulf %18, %2 : vector<8x4xf32>
    %c0_8 = arith.constant 0 : index
    %c4 = arith.constant 4 : index
    %20 = vector.load %arg4[%c0_8, %c4] : memref<8x25xf32, #tpu.memory_space<vmem>>, vector<8x4xf32>
    tpu.vector_store %arg4[%c0_8, %c4], %19 {strides = array<i32>} : memref<8x25xf32, #tpu.memory_space<vmem>>, vector<8x4xf32>,
    %21 = vector.broadcast %6 : vector<8x1xf32> to vector<8x4xf32>
    %22 = arith.mulf %21, %2 : vector<8x4xf32>
    %c0_9 = arith.constant 0 : index
    %c8 = arith.constant 8 : index
    %23 = vector.load %arg4[%c0_9, %c8] : memref<8x25xf32, #tpu.memory_space<vmem>>, vector<8x4xf32>
    tpu.vector_store %arg4[%c0_9, %c8], %22 {strides = array<i32>} : memref<8x25xf32, #tpu.memory_space<vmem>>, vector<8x4xf32>,
    %24 = vector.broadcast %11 : vector<8x1xf32> to vector<8x4xf32>
    %25 = arith.mulf %24, %2 : vector<8x4xf32>
    %c0_10 = arith.constant 0 : index
    %c12 = arith.constant 12 : index
    %26 = vector.load %arg4[%c0_10, %c12] : memref<8x25xf32, #tpu.memory_space<vmem>>, vector<8x4xf32>
    tpu.vector_store %arg4[%c0_10, %c12], %25 {strides = array<i32>} : memref<8x25xf32, #tpu.memory_space<vmem>>, vector<8x4xf32>,
    %27 = vector.broadcast %16 : vector<8x1xf32> to vector<8x4xf32>
    %28 = arith.mulf %27, %2 : vector<8x4xf32>
    %c0_11 = arith.constant 0 : index
    %c16 = arith.constant 16 : index
    %29 = vector.load %arg4[%c0_11, %c16] : memref<8x25xf32, #tpu.memory_space<vmem>>, vector<8x4xf32>
    tpu.vector_store %arg4[%c0_11, %c16], %28 {strides = array<i32>} : memref<8x25xf32, #tpu.memory_space<vmem>>, vector<8x4xf32>,
    %c0_12 = arith.constant 0 : index
    %c20 = arith.constant 20 : index
    %30 = vector.load %arg4[%c0_12, %c20] : memref<8x25xf32, #tpu.memory_space<vmem>>, vector<8x1xf32>
    tpu.vector_store %arg4[%c0_12, %c20], %3 {strides = array<i32>} : memref<8x25xf32, #tpu.memory_space<vmem>>, vector<8x1xf32>,
    %c0_13 = arith.constant 0 : index
    %c21 = arith.constant 21 : index
    %31 = vector.load %arg4[%c0_13, %c21] : memref<8x25xf32, #tpu.memory_space<vmem>>, vector<8x1xf32>
    tpu.vector_store %arg4[%c0_13, %c21], %5 {strides = array<i32>} : memref<8x25xf32, #tpu.memory_space<vmem>>, vector<8x1xf32>,
    %c0_14 = arith.constant 0 : index
    %c22 = arith.constant 22 : index
    %32 = vector.load %arg4[%c0_14, %c22] : memref<8x25xf32, #tpu.memory_space<vmem>>, vector<8x1xf32>
    tpu.vector_store %arg4[%c0_14, %c22], %6 {strides = array<i32>} : memref<8x25xf32, #tpu.memory_space<vmem>>, vector<8x1xf32>,
    %c0_15 = arith.constant 0 : index
    %c23 = arith.constant 23 : index
    %33 = vector.load %arg4[%c0_15, %c23] : memref<8x25xf32, #tpu.memory_space<vmem>>, vector<8x1xf32>
    tpu.vector_store %arg4[%c0_15, %c23], %11 {strides = array<i32>} : memref<8x25xf32, #tpu.memory_space<vmem>>, vector<8x1xf32>,
    %c0_16 = arith.constant 0 : index
    %c24 = arith.constant 24 : index
    %34 = vector.load %arg4[%c0_16, %c24] : memref<8x25xf32, #tpu.memory_space<vmem>>, vector<8x1xf32>
    tpu.vector_store %arg4[%c0_16, %c24], %16 {strides = array<i32>} : memref<8x25xf32, #tpu.memory_space<vmem>>, vector<8x1xf32>,
    %c0_17 = arith.constant 0 : index
    %c0_18 = arith.constant 0 : index
    %35 = vector.load %arg4[%c0_17, %c0_18] : memref<8x25xf32, #tpu.memory_space<vmem>>, vector<8x25xf32>
    %c0_19 = arith.constant 0 : index
    %c0_20 = arith.constant 0 : index
    %36 = vector.load %arg2[%c0_19, %c0_20] : memref<25x9xf32, #tpu.memory_space<vmem>>, vector<25x9xf32>
    %cst_21 = arith.constant dense<0.000000e+00> : vector<8x9xf32>
    %37 = tpu.matmul %35, %36, %cst_21 {dimension_numbers = #tpu.dot_dimension_numbers<[1], [0], [0], [1], [0, 0, 1, 1], [], []>} : vector<8x25xf32>, vector<25x9xf32>, vector<8x9xf32> -> vector<8x9xf32>
    %cst_22 = arith.constant 0.000000e+00 : f32
    %38 = vector.broadcast %cst_22 : f32 to vector<8x9xf32>
    %39 = arith.maximumf %37, %38 : vector<8x9xf32>
    %c0_23 = arith.constant 0 : index
    %c0_24 = arith.constant 0 : index
    %40 = vector.load %arg3[%c0_23, %c0_24] : memref<8x9xf32, #tpu.memory_space<vmem>>, vector<8x9xf32>
    tpu.vector_store %arg3[%c0_23, %c0_24], %39 {strides = array<i32>} : memref<8x9xf32, #tpu.memory_space<vmem>>, vector<8x9xf32>,
    %c0_25 = arith.constant 0 : index
    %c0_26 = arith.constant 0 : index
    %41 = vector.load %arg3[%c0_25, %c0_26] : memref<8x9xf32, #tpu.memory_space<vmem>>, vector<8x1xf32>
    tpu.vector_store %arg3[%c0_25, %c0_26], %1 {strides = array<i32>} : memref<8x9xf32, #tpu.memory_space<vmem>>, vector<8x1xf32>,
    return
  }
  func.func @transform_0(%arg0: i32) -> (i32, i32) {
    %c0_i32 = arith.constant 0 : i32
    %c0_i32_0 = arith.constant 0 : i32
    return %arg0, %c0_i32 : i32, i32
  }
  func.func @transform_1(%arg0: i32) -> (i32, i32) {
    %c0_i32 = arith.constant 0 : i32
    %c0_i32_0 = arith.constant 0 : i32
    %c0_i32_1 = arith.constant 0 : i32
    return %c0_i32, %c0_i32_0 : i32, i32
  }
  func.func @transform_2(%arg0: i32) -> (i32, i32) {
    %c0_i32 = arith.constant 0 : i32
    %c0_i32_0 = arith.constant 0 : i32
    return %arg0, %c0_i32 : i32, i32
  }
}

</mosaic_0001>

<llo_original>
// kernel: tpu_custom_call.1
$region0: #{tpu_custom_call.1}
  #allocation0 [shape = 'u32[]', space=smem, size = 0x4, offset = 0x4, fixed_abs, tag = 'smem constant byte address 0x4 - core index']
  #allocation1 [shape = 'u32[144,128]{1,0:T(1,128)}', space=vmem, size = 0x12000, scoped, tag = 'internal scratch']
  #allocation2 [shape = 'f32[8,25]{1,0:T(8,128)}', space=vmem, size = 0x1000, scoped, tag = 'scratch operand']
  %s0 = inlined_call_operand.vmem [shape: f32[8,5], index: 0, kind: input, shape index: {}]
  %s1 = inlined_call_operand.vmem [shape: f32[25,9], index: 1, kind: input, shape index: {}]
  %s2 = inlined_call_operand.hbm [shape: f32[8,9], index: 2, kind: output, shape index: {}]
  %s3 = sld [smem:[#allocation0]]
  $region18: #{tpu_custom_call.1} parent=0
    _
  %s5 = ssub.s32 1, %s3
  %s6 = scalar_select 0, %s5, %s3
  $region1: #{tpu_custom_call.1} parent=0
    #allocation3 [shape = 'u8[4096]{0}', space=vmem, size = 0x1000, scoped, tag = 'output window, operand 0, single buffered']
    #allocation4 [shape = 's32[1]{0}', space=sflag, size = 0x4, scoped, tag = 'scoped memory for tpu_custom_call.1']
    %7 = vsyncpa [#allocation4], 0
    // Predicated region
    $region2: #{tpu_custom_call.1} parent=1 // pred_check
      _
    $region3: #{tpu_custom_call.1} parent=1 // pred_check_branch
      %9 = sbr.rel (0) target = $region5
    $region4: #{tpu_custom_call.1} parent=1 // pred_region
      _
    $region5: #{tpu_custom_call.1} parent=1 // pred_fallthru
      _
    // Predicated region
    $region6: #{tpu_custom_call.1} parent=1 // pred_check
      _
    $region7: #{tpu_custom_call.1} parent=1 // pred_check_branch
      %11 = sbr.rel (0) target = $region9
    $region8: #{tpu_custom_call.1} parent=1 // pred_region
      _
    $region9: #{tpu_custom_call.1} parent=1 // pred_fallthru
      _
    %v12 = vld [vmem:[%s0] sm:$0xff]
    %v13 = vmul.f32 %v12, %v12
    %v14 = vsub.f32 %v12, 0.33333334
    %v15 = vmax.f32 %v14, 0.0
    %v16 = vmul.f32 %v15, %v15
    %v17 = vsub.f32 %v12, 0.6666667
    %v18 = vmax.f32 %v17, 0.0
    %v19 = vmul.f32 %v18, %v18
    %21 = vrot.lane.b32.xlu0 %v12, 127
    %v22 = vpop.permute.xlu0 %21
    %vm24 = vcmask 31744
    %25 = vst.msk [vmem:[#allocation2] sm:$0xff] %vm24, %v22
    %26 = vset.pattern.permute.xlu0 0
    %27 = vperm.xlu0 %26, %v12
    %v28 = vpop.permute.xlu0 %27
    %v30 = vmul.f32 %v28, %v12
    %32 = vrot.lane.b32.xlu0 %v30, 3
    %v33 = vpop.permute.xlu0 %32
    %vm35 = vcmask 64544
    %36 = vst.msk [vmem:[#allocation2] sm:$0xff] %vm35, %v33
    %38 = vset.pattern.permute.xlu0 0
    %39 = vperm.xlu0 %38, %v13
    %v40 = vpop.permute.xlu0 %39
    %v42 = vmul.f32 %v40, %v12
    %44 = vrot.lane.b32.xlu0 %v42, 7
    %v45 = vpop.permute.xlu0 %44
    %vm47 = vcmask 97344
    %48 = vst.msk [vmem:[#allocation2] sm:$0xff] %vm47, %v45
    %50 = vset.pattern.permute.xlu0 0
    %51 = vperm.xlu0 %50, %v16
    %v52 = vpop.permute.xlu0 %51
    %v54 = vmul.f32 %v52, %v12
    %56 = vrot.lane.b32.xlu0 %v54, 11
    %v57 = vpop.permute.xlu0 %56
    %vm59 = vcmask 130144
    %60 = vst.msk [vmem:[#allocation2] sm:$0xff] %vm59, %v57
    %62 = vset.pattern.permute.xlu0 0
    %63 = vperm.xlu0 %62, %v19
    %v64 = vpop.permute.xlu0 %63
    %v66 = vmul.f32 %v64, %v12
    %68 = vrot.lane.b32.xlu0 %v66, 15
    %v69 = vpop.permute.xlu0 %68
    %vm71 = vcmask 162944
    %72 = vst.msk [vmem:[#allocation2] sm:$0xff] %vm71, %v69
    %vm73 = vcmask 171168
    %74 = vst.msk [vmem:[#allocation2] sm:$0xff] %vm73, 1.0
    %75 = vrot.lane.b32.xlu0 %v12, 21
    %v76 = vpop.permute.xlu0 %75
    %vm78 = vcmask 179368
    %79 = vst.msk [vmem:[#allocation2] sm:$0xff] %vm78, %v76
    %80 = vrot.lane.b32.xlu0 %v13, 22
    %v81 = vpop.permute.xlu0 %80
    %vm83 = vcmask 187568
    %84 = vst.msk [vmem:[#allocation2] sm:$0xff] %vm83, %v81
    %85 = vrot.lane.b32.xlu0 %v16, 23
    %v86 = vpop.permute.xlu0 %85
    %vm88 = vcmask 195768
    %89 = vst.msk [vmem:[#allocation2] sm:$0xff] %vm88, %v86
    %90 = vrot.lane.b32.xlu0 %v19, 24
    %v91 = vpop.permute.xlu0 %90
    %vm93 = vcmask 203968
    %94 = vst.msk [vmem:[#allocation2] sm:$0xff] %vm93, %v91
    %v95 = vld [vmem:[#allocation2] sm:$0xff]
    %v96 = vld [vmem:[%s1] sm:$0xff]
    %v97 = vld [vmem:[%s1 + $0x8] sm:$0xff]
    %v98 = vld [vmem:[%s1 + $0x10] sm:$0xff]
    %v99 = vld [vmem:[%s1 + $0x18] sm:$0x1]
    %vm100 = vcmask 203776
    %v102 = vsel %vm100, %v95, 0
    %vm104 = vcmask 1040384
    %v106 = vsel %vm104, %v99, 0
    %108 = vmatprep.subr.mxu0 0.0
    %109 = vmatpush1.msra.mxu0 %v96
    %110 = vmatprep.subr.mxu0 0.0
    %111 = vmatpush1.msra.mxu0 %v97
    %112 = vmatprep.subr.mxu0 0.0
    %113 = vmatpush1.msra.mxu0 %v98
    %114 = vmatprep.subr.mxu0 0.0
    %115 = vmatpush1.msra.mxu0 %v106
    %116 = vmatprep.subr.mxu0 0.0
    %117 = vmatpush1.msra.mxu0 0.0
    %118 = vmatprep.subr.mxu0 0.0
    %119 = vmatpush1.msra.mxu0 0.0
    %120 = vmatprep.subr.mxu0 0.0
    %121 = vmatpush1.msra.mxu0 0.0
    %122 = vmatprep.subr.mxu0 0.0
    %123 = vmatpush1.msra.mxu0 0.0
    %124 = vmatprep.subr.mxu0 0.0
    %125 = vmatpush1.msra.mxu0 0.0
    %126 = vmatprep.subr.mxu0 0.0
    %127 = vmatpush1.msra.mxu0 0.0
    %128 = vmatprep.subr.mxu0 0.0
    %129 = vmatpush1.msra.mxu0 0.0
    %130 = vmatprep.subr.mxu0 0.0
    %131 = vmatpush1.msra.mxu0 0.0
    %132 = vmatprep.subr.mxu0 0.0
    %133 = vmatpush1.msra.mxu0 0.0
    %134 = vmatprep.subr.mxu0 0.0
    %135 = vmatpush1.msra.mxu0 0.0
    %136 = vmatprep.subr.mxu0 0.0
    %137 = vmatpush1.msra.mxu0 0.0
    %138 = vmatprep.subr.mxu0 0.0
    %139 = vmatpush1.msra.mxu0 0.0
    %140 = vmatprep.subr.mxu0 0.0
    %141 = vmatpush1.msra.mxu0 0.0
    %142 = vmatprep.subr.mxu0 0.0
    %143 = vmatpush1.msra.mxu0 0.0
    %144 = vmatprep.subr.mxu0 0.0
    %145 = vmatpush1.msra.mxu0 0.0
    %146 = vmatprep.subr.mxu0 0.0
    %147 = vmatpush1.msra.mxu0 0.0
    %148 = vmatprep.subr.mxu0 0.0
    %149 = vmatpush1.msra.mxu0 0.0
    %150 = vmatprep.subr.mxu0 0.0
    %151 = vmatpush1.msra.mxu0 0.0
    %152 = vmatprep.subr.mxu0 0.0
    %153 = vmatpush1.msra.mxu0 0.0
    %154 = vmatprep.subr.mxu0 0.0
    %155 = vmatpush1.msra.mxu0 0.0
    %156 = vmatprep.subr.mxu0 0.0
    %157 = vmatpush1.msra.mxu0 0.0
    %158 = vmatprep.subr.mxu0 0.0
    %159 = vmatpush1.msra.mxu0 0.0
    %160 = vmatprep.subr.mxu0 0.0
    %161 = vmatpush1.msra.mxu0 0.0
    %162 = vmatprep.subr.mxu0 0.0
    %163 = vmatpush1.msra.mxu0 0.0
    %164 = vmatprep.subr.mxu0 0.0
    %165 = vmatpush1.msra.mxu0 0.0
    %166 = vmatprep.subr.mxu0 0.0
    %167 = vmatpush1.msra.mxu0 0.0
    %168 = vmatprep.subr.mxu0 0.0
    %169 = vmatpush1.msra.mxu0 0.0
    %170 = vmatprep.subr.mxu0 0.0
    %171 = vmatpush1.msra.mxu0 0.0
    %172 = vmatprep.mubr.f32.mxu0 0.0
    %173 = vmatmul.mubr.f32.gmra.mrb[0].mxu0 %v102
    %v174 = vpop.f32.mrb[0].mxu0
    %v175 = vadd.f32 0.0, %v174
    %v176 = vpop.f32.mrb[0].mxu0
    %177 = vdwg.mxu0
    %v178 = vmax.f32 %v175, 0.0
    %vm179 = vcmask 72704
    %180 = vst.msk [vmem:[#allocation3] sm:$0xff] %vm179, %v178
    %vm181 = vcmask 7168
    %182 = vst.msk [vmem:[#allocation3] sm:$0xff] %vm181, %v12
    // Predicated region
    $region10: #{tpu_custom_call.1} parent=1 // pred_check
      _
    $region11: #{tpu_custom_call.1} parent=1 // pred_check_branch
      %184 = sbr.rel (0) target = $region13
    $region12: #{tpu_custom_call.1} parent=1 // pred_region
      %s186 = ssub.s32 128, 128
      %187 = vsyncadd [#allocation4], %s186
      %s189 = sshll.u32 [#allocation3], 4
      %s190 = int_to_ptr.vmem [resolvable:$true] %s189
      %192 = dma.vmem_to_hbm [thread:$0]  %s190, 128, %s2, [#allocation4]
    $region13: #{tpu_custom_call.1} parent=1 // pred_fallthru
      _
    // Predicated region
    $region14: #{tpu_custom_call.1} parent=1 // pred_check
      _
    $region15: #{tpu_custom_call.1} parent=1 // pred_check_branch
      %194 = sbr.rel (0) target = $region17
    $region16: #{tpu_custom_call.1} parent=1 // pred_region
      %195 = dma.done [#allocation4], 128
    $region17: #{tpu_custom_call.1} parent=1 // pred_fallthru
      _
    %196 = vsyncpa [#allocation4], 1

</llo_original>
